<compile_context>
chip_gen: v6e
topology: v6e:2x2x1
jax: 0.10.0
libtpu: 0.0.40
codegen_flags: <defaults>
</compile_context>

<pallas_src>
import functools

import jax
import jax.numpy as jnp
from jax import lax
from jax.experimental import pallas as pl
from jax.experimental.pallas import tpu as pltpu


# ----------------------------- Pallas kernel -------------------------------

def _ce_partial_kernel(logits_ref, tgt_ref, out_ref, *, n_valid):
    """One row-tile of cross-entropy -> per-tile partial loss sum.

    logits_ref: (tn, C) VMEM tile in the input dtype (bf16/f32).  The last
                grid tile may contain undefined rows past n_valid; they are
                masked below.
    tgt_ref:    (tn, 1) i32 VMEM tile of class indices.
    out_ref:    (8, 128) f32 VMEM block; the tile's partial sum is broadcast
                into it (lane-dense, unmasked store).  Wrapper reads [0, 0].
    """
    i = pl.program_id(0)

    x = logits_ref[...].astype(jnp.float32)           # upcast in-kernel
    tn, c = x.shape

    # Numerically-stable logsumexp over classes (block spans full class dim,
    # so no column masking is needed).
    m = jnp.max(x, axis=-1, keepdims=True)            # (tn, 1)
    e = jnp.exp(x - m)
    s = jnp.sum(e, axis=-1, keepdims=True)            # (tn, 1)
    lse = m + jnp.log(s)                              # (tn, 1)

    # Target logit via one-hot select (vectorized gather).
    col = lax.broadcasted_iota(jnp.int32, (tn, c), 1)
    t = tgt_ref[...]                                  # (tn, 1) i32
    tgt_logit = jnp.sum(jnp.where(col == t, x, 0.0),
                        axis=-1, keepdims=True)       # (tn, 1)

    # Mask rows past the true batch size (ragged last tile).  Must stay AFTER
    # lse/tgt_logit so NaN/Inf garbage in the undefined rows is excluded by
    # the select and never reaches the reduction.
    row = lax.broadcasted_iota(jnp.int32, (tn, 1), 0) + i * tn
    per_row = jnp.where(row < n_valid, lse - tgt_logit, 0.0)

    partial = jnp.sum(per_row)                        # one tiny reduce / tile
    out_ref[...] = jnp.full(out_ref.shape, partial, dtype=jnp.float32)


# ------------------------------ wrapper -------------------------------------

def _round_up(x, m):
    return (x + m - 1) // m * m


def dhc_loss(logits, targets, *, tile_n=None, tile_bytes=2 * 1024 * 1024):
    """Cross-entropy loss with mean reduction (== DHCLoss.forward).

    logits:  (N, C) float (f32 or bf16 -- kept in its dtype for the HBM read)
    targets: (N,)   integer class indices
    returns: scalar f32 loss
    """
    N, C = logits.shape
    itemsize = jnp.dtype(logits.dtype).itemsize

    if tile_n is None:
        # Size the row tile off a VMEM budget: ~tile_bytes of logits per tile
        # (double-buffered by the pipeline), rounded down to a sublane
        # multiple of 8.
        tn = max(8, (tile_bytes // max(1, C * itemsize)) // 8 * 8)
    else:
        tn = _round_up(max(1, tile_n), 8)
    tn = min(tn, _round_up(N, 8))                     # never exceed the batch
    grid = pl.cdiv(N, tn)

    tgt2d = targets.astype(jnp.int32).reshape(N, 1)
    kernel = functools.partial(_ce_partial_kernel, n_valid=N)

    partials = pl.pallas_call(
        kernel,
        out_shape=jax.ShapeDtypeStruct((8 * grid, 128), jnp.float32),
        grid=(grid,),
        in_specs=[pl.BlockSpec((tn, C), lambda i: (i, 0)),   # full class dim
                  pl.BlockSpec((tn, 1), lambda i: (i, 0))],
        out_specs=pl.BlockSpec((8, 128), lambda i: (i, 0)),  # lane-dense
        compiler_params=pltpu.CompilerParams(
            # Tiles are fully independent -> megacore sharding on v7x.
            dimension_semantics=("parallel",),
            # Raise the scoped VMEM ceiling (v5e default is only 16 MiB) so
            # the larger tiles keep two pipeline buffers; 32 MiB is safe on
            # every generation and far above the ~4-5 MiB actually needed.
            vmem_limit_bytes=32 * 1024 * 1024),
    )(logits, tgt2d)

    # Tiny final reduction over the G per-tile partial sums, then the mean.
    return jnp.sum(partials[0::8, 0]) * (1.0 / N)


# --------------------------- pure-JAX reference ------------------------------

def dhc_loss_reference(logits, targets):
    x = logits.astype(jnp.float32)
    lse = jax.scipy.special.logsumexp(x, axis=-1)
    tgt = jnp.take_along_axis(x, targets[:, None].astype(jnp.int32), axis=-1)[:, 0]
    return jnp.mean(lse - tgt)


# ----------------------------------- main ------------------------------------

if __name__ == "__main__":
    key = jax.random.PRNGKey(0)
    k1, k2, k3, k4 = jax.random.split(key, 4)

    # Case 1: shapes matching the module's typical use (5-way episode,
    # 19 query examples), f32 logits.  tile_n=8 forces a 3-tile grid so the
    # ragged-last-tile masking and multi-tile partial-sum path are exercised.
    N1, C1 = 19, 5
    logits1 = 3.0 * jax.random.normal(k1, (N1, C1), jnp.float32)
    targets1 = jax.random.randint(k2, (N1,), 0, C1, jnp.int32)

    loss_fn1 = jax.jit(lambda l, t: dhc_loss(l, t, tile_n=8))
    loss1 = jax.block_until_ready(loss_fn1(logits1, targets1))
    ref1 = jax.block_until_ready(dhc_loss_reference(logits1, targets1))
    assert loss1.shape == (), loss1.shape
    assert jnp.allclose(loss1, ref1, rtol=1e-4, atol=1e-5), (float(loss1), float(ref1))

    # Case 2: bf16 logits (kept bf16 for the HBM read, upcast in-kernel) with
    # the default VMEM-budget tile sizing (single tile here).
    N2, C2 = 64, 10
    logits2 = (2.0 * jax.random.normal(k3, (N2, C2), jnp.float32)).astype(jnp.bfloat16)
    targets2 = jax.random.randint(k4, (N2,), 0, C2, jnp.int32)

    loss_fn2 = jax.jit(dhc_loss)
    loss2 = jax.block_until_ready(loss_fn2(logits2, targets2))
    ref2 = jax.block_until_ready(dhc_loss_reference(logits2, targets2))
    assert loss2.shape == (), loss2.shape
    assert jnp.allclose(loss2, ref2, rtol=1e-4, atol=1e-5), (float(loss2), float(ref2))

    print("KERNEL_OK")
</pallas_src>

<mosaic_0001>
module attributes {stable_mosaic.version = 11 : i64} {
  func.func @_ce_partial_kernel(%arg0: i32, %arg1: memref<8x5xf32, #tpu.memory_space<vmem>>, %arg2: memref<8x1xi32, #tpu.memory_space<vmem>>, %arg3: memref<8x128xf32, #tpu.memory_space<vmem>>) attributes {dimension_semantics = [#tpu.dimension_semantics<parallel>], iteration_bounds = array<i64: 3>, scalar_prefetch = 0 : i64, scratch_operands = 0 : i64, tpu.core_type = #tpu.core_type<tc>, window_params = [{transform_indices = @transform_0, window_bounds = array<i64: 8, 5>}, {transform_indices = @transform_1, window_bounds = array<i64: 8, 1>}, {transform_indices = @transform_2, window_bounds = array<i64: 8, 128>}]} {
    %c0 = arith.constant 0 : index
    %c0_0 = arith.constant 0 : index
    %0 = vector.load %arg1[%c0, %c0_0] : memref<8x5xf32, #tpu.memory_space<vmem>>, vector<8x5xf32>
    %cst = arith.constant dense<0xFF800000> : vector<8xf32>
    %1 = vector.multi_reduction <maximumf>, %0, %cst [1] : vector<8x5xf32> to vector<8xf32>
    %2 = vector.shape_cast %1 : vector<8xf32> to vector<8x1xf32>
    %3 = vector.broadcast %2 : vector<8x1xf32> to vector<8x5xf32>
    %4 = arith.subf %0, %3 : vector<8x5xf32>
    %5 = math.exp %4 : vector<8x5xf32>
    %cst_1 = arith.constant dense<0.000000e+00> : vector<8xf32>
    %6 = vector.multi_reduction <add>, %5, %cst_1 [1] : vector<8x5xf32> to vector<8xf32>
    %7 = vector.shape_cast %6 : vector<8xf32> to vector<8x1xf32>
    %8 = math.log %7 : vector<8x1xf32>
    %9 = arith.addf %2, %8 : vector<8x1xf32>
    %10 = tpu.iota {dimensions = array<i32: 1>} : vector<8x5xi32>
    %c0_2 = arith.constant 0 : index
    %c0_3 = arith.constant 0 : index
    %11 = vector.load %arg2[%c0_2, %c0_3] : memref<8x1xi32, #tpu.memory_space<vmem>>, vector<8x1xi32>
    %12 = vector.broadcast %11 : vector<8x1xi32> to vector<8x5xi32>
    %13 = arith.cmpi eq, %10, %12 : vector<8x5xi32>
    %cst_4 = arith.constant 0.000000e+00 : f32
    %14 = vector.broadcast %cst_4 : f32 to vector<8x5xf32>
    %15 = arith.select %13, %0, %14 : vector<8x5xi1>, vector<8x5xf32>
    %cst_5 = arith.constant dense<0.000000e+00> : vector<8xf32>
    %16 = vector.multi_reduction <add>, %15, %cst_5 [1] : vector<8x5xf32> to vector<8xf32>
    %17 = vector.shape_cast %16 : vector<8xf32> to vector<8x1xf32>
    %18 = tpu.iota {dimensions = array<i32: 0>} : vector<8x1xi32>
    %c8_i32 = arith.constant 8 : i32
    %19 = arith.muli %arg0, %c8_i32 : i32
    %20 = vector.broadcast %19 : i32 to vector<8x1xi32>
    %21 = arith.addi %18, %20 : vector<8x1xi32>
    %c19_i32 = arith.constant 19 : i32
    %22 = vector.broadcast %c19_i32 : i32 to vector<8x1xi32>
    %23 = arith.cmpi slt, %21, %22 : vector<8x1xi32>
    %24 = arith.subf %9, %17 : vector<8x1xf32>
    %cst_6 = arith.constant 0.000000e+00 : f32
    %25 = vector.broadcast %cst_6 : f32 to vector<8x1xf32>
    %26 = arith.select %23, %24, %25 : vector<8x1xi1>, vector<8x1xf32>
    %27 = vector.shape_cast %26 : vector<8x1xf32> to vector<1x8x1xf32>
    %cst_7 = arith.constant dense<0.000000e+00> : vector<1xf32>
    %28 = vector.multi_reduction <add>, %27, %cst_7 [1, 2] : vector<1x8x1xf32> to vector<1xf32>
    %29 = vector.shape_cast %28 : vector<1xf32> to vector<1x1x1xf32>
    %30 = vector.extract %29[0, 0, 0] : f32 from vector<1x1x1xf32>
    %31 = vector.broadcast %30 : f32 to vector<8x128xf32>
    %c0_8 = arith.constant 0 : index
    %c0_9 = arith.constant 0 : index
    %32 = vector.load %arg3[%c0_8, %c0_9] : memref<8x128xf32, #tpu.memory_space<vmem>>, vector<8x128xf32>
    tpu.vector_store %arg3[%c0_8, %c0_9], %31 {strides = array<i32>} : memref<8x128xf32, #tpu.memory_space<vmem>>, vector<8x128xf32>,
    return
  }
  func.func @transform_0(%arg0: i32) -> (i32, i32) {
    %c0_i32 = arith.constant 0 : i32
    %c0_i32_0 = arith.constant 0 : i32
    return %arg0, %c0_i32 : i32, i32
  }
  func.func @transform_1(%arg0: i32) -> (i32, i32) {
    %c0_i32 = arith.constant 0 : i32
    %c0_i32_0 = arith.constant 0 : i32
    return %arg0, %c0_i32 : i32, i32
  }
  func.func @transform_2(%arg0: i32) -> (i32, i32) {
    %c0_i32 = arith.constant 0 : i32
    %c0_i32_0 = arith.constant 0 : i32
    return %arg0, %c0_i32 : i32, i32
  }
}

</mosaic_0001>

<llo_original>
// kernel: _lambda_.1
$region0: #{_lambda_.1}
  #allocation0 [shape = 'u32[]', space=smem, size = 0x4, offset = 0x4, fixed_abs, tag = 'smem constant byte address 0x4 - core index']
  #allocation1 [shape = 'u32[144,128]{1,0:T(1,128)}', space=vmem, size = 0x12000, scoped, tag = 'internal scratch']
  %s0 = inlined_call_operand.vmem [shape: f32[19,5], index: 0, kind: input, shape index: {}]
  %s1 = inlined_call_operand.vmem [shape: s32[19,1], index: 1, kind: input, shape index: {}]
  %s2 = inlined_call_operand.vmem [shape: f32[24,128], index: 2, kind: output, shape index: {}]
  %s3 = sld [smem:[#allocation0]]
  $region41: #{_lambda_.1} parent=0
    _
  %s5 = ssub.s32 1, %s3
  %s6 = scalar_select 0, %s5, %s3
  loop: start=0, step=1, limit=5
  $region2: #{_lambda_.1} parent=0 // loop_pre_header
    _
  $region3: #{_lambda_.1} parent=0 // loop_header
    %s8 = sphi 0, %s12
    %p9 = scmp.ge.s32.totalorder %s8, 5
    %s18 = sphi 0, %s20
    %s21 = sphi 0, %s18
    %s22 = sphi 0, %s21
    %s38 = sphi 0, %s22
    %s44 = sphi 0, %s46
    %s47 = sphi 0, %s44
    %s48 = sphi 0, %s47
    %s64 = sphi 0, %s48
    %s70 = sphi 0, %s72
    %s73 = sphi 0, %s70
    %s74 = sphi 0, %s73
    %s90 = sphi 0, %s74
  $region4: #{_lambda_.1} parent=0 // loop_header_branch
    %11 = sbr.rel (%p9) target = $region8
  $region5: #{_lambda_.1} parent=0 // loop_body
    %s13 = ssub.s32 %s8, 1
    %s14 = ssub.s32 %s8, 2
    %s15 = sadd.s32 %s8, 1
    %s16 = ssub.s32 %s8, %s15
    %p17 = scmp.eq.s32.totalorder %s16, 0
    %s19 = sadd.s32 %s18, 1
    %s20 = scalar_select %p17, %s18, %s19
    %p23 = pneg %p17
    %p24 = scmp.eq.s32.totalorder %s8, 2
    %p25 = por %p23, %p24
    %p26 = scmp.ne.s32.totalorder %s18, %s21
    %p27 = scmp.eq.s32.totalorder %s8, 0
    %p28 = por %p26, %p27
    %p29 = scmp.ne.s32.totalorder %s18, %s21
    %p30 = scmp.eq.s32.totalorder %s13, 2
    %p31 = por %p29, %p30
    %p32 = scmp.ne.s32.totalorder %s21, %s22
    %p33 = scmp.eq.s32.totalorder %s13, 0
    %p34 = por %p32, %p33
    %p35 = scmp.ne.s32.totalorder %s21, %s22
    %p36 = scmp.eq.s32.totalorder %s14, 2
    %p37 = por %p35, %p36
    %p39 = scmp.ne.s32.totalorder %s22, %s38
    %p40 = scmp.eq.s32.totalorder %s14, 0
    %p41 = por %p39, %p40
    %s42 = ssub.s32 %s8, %s15
    %p43 = scmp.eq.s32.totalorder %s42, 0
    %s45 = sadd.s32 %s44, 1
    %s46 = scalar_select %p43, %s44, %s45
    %p49 = pneg %p43
    %p50 = scmp.eq.s32.totalorder %s8, 2
    %p51 = por %p49, %p50
    %p52 = scmp.ne.s32.totalorder %s44, %s47
    %p53 = scmp.eq.s32.totalorder %s8, 0
    %p54 = por %p52, %p53
    %p55 = scmp.ne.s32.totalorder %s44, %s47
    %p56 = scmp.eq.s32.totalorder %s13, 2
    %p57 = por %p55, %p56
    %p58 = scmp.ne.s32.totalorder %s47, %s48
    %p59 = scmp.eq.s32.totalorder %s13, 0
    %p60 = por %p58, %p59
    %p61 = scmp.ne.s32.totalorder %s47, %s48
    %p62 = scmp.eq.s32.totalorder %s14, 2
    %p63 = por %p61, %p62
    %p65 = scmp.ne.s32.totalorder %s48, %s64
    %p66 = scmp.eq.s32.totalorder %s14, 0
    %p67 = por %p65, %p66
    %s68 = ssub.s32 %s8, %s15
    %p69 = scmp.eq.s32.totalorder %s68, 0
    %s71 = sadd.s32 %s70, 1
    %s72 = scalar_select %p69, %s70, %s71
    %p75 = pneg %p69
    %p76 = scmp.eq.s32.totalorder %s8, 2
    %p77 = por %p75, %p76
    %p78 = scmp.ne.s32.totalorder %s70, %s73
    %p79 = scmp.eq.s32.totalorder %s8, 0
    %p80 = por %p78, %p79
    %p81 = scmp.ne.s32.totalorder %s70, %s73
    %p82 = scmp.eq.s32.totalorder %s13, 2
    %p83 = por %p81, %p82
    %p84 = scmp.ne.s32.totalorder %s73, %s74
    %p85 = scmp.eq.s32.totalorder %s13, 0
    %p86 = por %p84, %p85
    %p87 = scmp.ne.s32.totalorder %s73, %s74
    %p88 = scmp.eq.s32.totalorder %s14, 2
    %p89 = por %p87, %p88
    %p91 = scmp.ne.s32.totalorder %s74, %s90
    %p92 = scmp.eq.s32.totalorder %s14, 0
    %p93 = por %p91, %p92
    %p94 = scmp.le.s32.totalorder 1, %s8
    %p95 = scmp.lt.s32.totalorder %s8, 4
    %p96 = pnand %p94, %p95
    %p97 = pneg %p96
    // Predicated region
    $region9: #{_lambda_.1} parent=5 // pred_check
      _
    $region10: #{_lambda_.1} parent=5 // pred_check_branch
      %99 = sbr.rel (%p96) target = $region12
    $region11: #{_lambda_.1} parent=5 // pred_region
      %s100 = ssub.s32 %s8, 1
    $region12: #{_lambda_.1} parent=5 // pred_fallthru
      _
    %p101 = scmp.lt.s32.totalorder %s8, 3
    // Predicated region
    $region13: #{_lambda_.1} parent=5 // pred_check
      %p102 = pneg %p101
    $region14: #{_lambda_.1} parent=5 // pred_check_branch
      %104 = sbr.rel (%p102) target = $region16
    $region15: #{_lambda_.1} parent=5 // pred_region
      // Predicated region
      $region17: #{_lambda_.1} parent=15 // pred_check
        %p105 = pneg %p28
      $region18: #{_lambda_.1} parent=15 // pred_check_branch
        %107 = sbr.rel (%p105) target = $region20
      $region19: #{_lambda_.1} parent=15 // pred_region
        %p108 = scmp.lt.s32.totalorder %s8, 2
        %s109 = scalar_select %p108, %s8, 2
        %s110 = smul.addr %s109, 8
        %s111 = scalar_lea.vmem %s0, %s110
      $region20: #{_lambda_.1} parent=15 // pred_fallthru
        _
      // Predicated region
      $region21: #{_lambda_.1} parent=15 // pred_check
        %p112 = pneg %p54
      $region22: #{_lambda_.1} parent=15 // pred_check_branch
        %114 = sbr.rel (%p112) target = $region24
      $region23: #{_lambda_.1} parent=15 // pred_region
        %p115 = scmp.lt.s32.totalorder %s8, 2
        %s116 = scalar_select %p115, %s8, 2
        %s117 = smul.addr %s116, 8
        %s118 = scalar_lea.vmem %s1, %s117
      $region24: #{_lambda_.1} parent=15 // pred_fallthru
        _
    $region16: #{_lambda_.1} parent=5 // pred_fallthru
      _
    %p119 = scmp.le.s32.totalorder 1, %s8
    %p120 = scmp.lt.s32.totalorder %s8, 4
    %p121 = pnand %p119, %p120
    %p122 = pneg %p121
    // Predicated region
    $region25: #{_lambda_.1} parent=5 // pred_check
      _
    $region26: #{_lambda_.1} parent=5 // pred_check_branch
      %124 = sbr.rel (%p121) target = $region28
    $region27: #{_lambda_.1} parent=5 // pred_region
      %s125 = ssub.s32 %s8, 1
      %p126 = scmp.lt.s32.totalorder %s13, 2
      %s127 = scalar_select %p126, %s13, 2
      %s128 = smul.addr %s127, 8
      %s129 = scalar_lea.vmem %s0, %s128
      %p130 = pneg %p34
      %p131 = pneg %p31
      %p132 = scmp.lt.s32.totalorder %s13, 2
      %s133 = scalar_select %p132, %s13, 2
      %s134 = smul.addr %s133, 8
      %s135 = scalar_lea.vmem %s1, %s134
      %p136 = pneg %p60
      %p137 = pneg %p57
      %p138 = pneg %p86
      %p139 = pneg %p83
      %p140 = scmp.lt.s32.totalorder %s13, 2
      %s141 = scalar_select %p140, %s13, 2
      %s142 = smul.addr %s141, 8
      %s143 = scalar_lea.vmem %s2, %s142
      %p144 = scmp.lt.s32.totalorder %s13, 2
      %s145 = scalar_select %p144, %s13, 2
      %s146 = smul.addr %s145, 8
      %s147 = scalar_lea.vmem %s0, %s146
      %p148 = scmp.lt.s32.totalorder %s13, 2
      %s149 = scalar_select %p148, %s13, 2
      %s150 = smul.addr %s149, 8
      %s151 = scalar_lea.vmem %s1, %s150
      %p152 = scmp.lt.s32.totalorder %s13, 2
      %s153 = scalar_select %p152, %s13, 2
      %s154 = smul.addr %s153, 8
      %s155 = scalar_lea.vmem %s2, %s154
      %v156 = vld [vmem:[%s147] sm:$0xff]
      %vm157 = vcmask 39936
      %v158 = vsel %vm157, %v156, -inf
      %159 = vmax.xlane.f32.xlu0 %v158
      %v160 = vpop.xlane.xlu0 %159
      %v161 = vsub.f32 %v156, %v160
      %v162 = vmul.f32 %v161, 1.442695
      %v163 = vpow.pop %v162
      %v164 = vsel %vm157, %v163, 0.0
      %165 = vadd.xlane.f32.xlu0 %v164
      %v166 = vpop.xlane.xlu0 %165
      %v167 = vlog2.pop %v166
      %v168 = vmul.f32 %v167, 0.6931472
      %v169 = vadd.f32 %v160, %v168
      %v170 = vlaneseq
      %v171 = vand.u32 %v170, 127
      %v172 = vld [vmem:[%s151] sm:$0xff]
      %173 = vset.pattern.permute.xlu0 0
      %174 = vperm.xlu0 %173, %v172
      %v175 = vpop.permute.xlu0 %174
      %vm176 = vcmp.eq.s32.totalorder %v171, %v175
      %v177 = vsel %vm176, %v156, 0.0
      %v178 = vsel %vm157, %v177, 0.0
      %179 = vadd.xlane.f32.xlu0 %v178
      %v180 = vpop.xlane.xlu0 %179
      %v181 = vlaneseq
      %v182 = vshrl.u32 %v181, 7
      %s183 = smul.u32 %s13, 8
      %v184 = vstv %s183
      %v185 = vadd.s32 %v182, %v184
      %vm186 = vcmp.lt.s32.totalorder %v185, 19
      %v187 = vsub.f32 %v169, %v180
      %v188 = vsel %vm186, %v187, 0.0
      %vm189 = vcmask 7168
      %v190 = vsel %vm189, %v188, 0.0
      %191 = vadd.xlane.f32.xlu0 %v190
      %v192 = vpop.xlane.xlu0 %191
      %v193 = vrot.slane %v192, 4
      %v194 = vadd.f32 %v192, %v193
      %v195 = vrot.slane %v194, 2
      %v196 = vadd.f32 %v194, %v195
      %v197 = vrot.slane %v196, 1
      %v198 = vadd.f32 %v196, %v197
      %s199 = vtos %v198
      %v200 = vstv %s199
      %201 = vst [vmem:[%s155] sm:$0xff] %v200
      %p202 = scmp.lt.s32.totalorder %s13, 2
      %s203 = scalar_select %p202, %s13, 2
      %s204 = smul.addr %s203, 8
      %s205 = scalar_lea.vmem %s2, %s204
      // Predicated region
      $region29: #{_lambda_.1} parent=27 // pred_check
        %p206 = pneg %p83
      $region30: #{_lambda_.1} parent=27 // pred_check_branch
        %208 = sbr.rel (%p206) target = $region32
      $region31: #{_lambda_.1} parent=27 // pred_region
        _
      $region32: #{_lambda_.1} parent=27 // pred_fallthru
        _
    $region28: #{_lambda_.1} parent=5 // pred_fallthru
      _
    %p209 = scmp.le.s32.totalorder 2, %s8
    // Predicated region
    $region33: #{_lambda_.1} parent=5 // pred_check
      %p210 = pneg %p209
    $region34: #{_lambda_.1} parent=5 // pred_check_branch
      %212 = sbr.rel (%p210) target = $region36
    $region35: #{_lambda_.1} parent=5 // pred_region
      %s213 = ssub.s32 %s8, 2
      // Predicated region
      $region37: #{_lambda_.1} parent=35 // pred_check
        %p214 = pneg %p89
      $region38: #{_lambda_.1} parent=35 // pred_check_branch
        %216 = sbr.rel (%p214) target = $region40
      $region39: #{_lambda_.1} parent=35 // pred_region
        %p217 = scmp.lt.s32.totalorder %s14, 2
        %s218 = scalar_select %p217, %s14, 2
        %s219 = smul.addr %s218, 8
        %s220 = scalar_lea.vmem %s2, %s219
      $region40: #{_lambda_.1} parent=35 // pred_fallthru
        _
    $region36: #{_lambda_.1} parent=5 // pred_fallthru
      _
  $region6: #{_lambda_.1} parent=0 // loop_footer
    %s12 = sadd.s32 1, %s8
  $region7: #{_lambda_.1} parent=0 // loop_footer_branch
    %7 = sbr.rel target = $region3
  $region8: #{_lambda_.1} parent=0 // loop_exit
    _

</llo_original>
